<compile_context>
chip_gen: v7x
topology: tpu7x:2x2x1
jax: 0.10.0
libtpu: 0.0.40
codegen_flags: <defaults>
</compile_context>

<pallas_src>
import functools
import math

import jax
import jax.numpy as jnp
from jax.experimental import pallas as pl
from jax.experimental.pallas import tpu as pltpu


def _token_emb_kernel(x_ref, w_ref, b_ref, o_ref, *, seqs, seq_len, c_in):
    # x_ref: (seqs, L, c_in) VMEM tile holding `seqs` whole sequences.
    x0 = x_ref[...]
    # Circular shifts along the sequence axis, computed on the resident tile.
    # (static shift -> lax.slice + concatenate, all on-chip)
    x_m1 = jnp.roll(x0, 1, axis=1)    # x[:, t-1, :] with wrap-around  (tap k=0)
    x_p1 = jnp.roll(x0, -1, axis=1)   # x[:, t+1, :] with wrap-around  (tap k=2)

    # Fuse the three taps into a single K = 3*c_in matmul.
    lhs = jnp.concatenate([x_m1, x0, x_p1], axis=-1)          # (seqs, L, 3*c_in)
    lhs = lhs.reshape(seqs * seq_len, 3 * c_in)               # (TB*L, 3*c_in)

    acc = jnp.dot(lhs, w_ref[...], preferred_element_type=jnp.float32)
    o_ref[...] = (acc + b_ref[...]).astype(o_ref.dtype)


def _choose_seqs_per_block(B, L, target_rows=1024):
    """Whole sequences per tile: divisor of B, ~target_rows rows, sublane-friendly."""
    tb = max(1, min(B, target_rows // max(L, 1)))
    while B % tb:
        tb -= 1
    # Output block's row dim must be a multiple of 8 (or cover the full B*L).
    if (tb * L) % 8 != 0 and tb != B:
        tb = B
    return tb


def token_embedding(x, weight, bias, *, target_rows=1024):
    """x: (B, L, c_in) float32. weight: (d_model, c_in, 3). bias: (d_model,)."""
    B, L, c_in = x.shape
    d_model = weight.shape[0]

    # Pack per-tap weights into one (3*c_in, d_model) matrix: rows [W0; W1; W2],
    # W_k = weight[:, :, k].T, matching the in-kernel [x_m1 | x_0 | x_p1] concat.
    w3 = jnp.concatenate(
        [weight[:, :, 0].T, weight[:, :, 1].T, weight[:, :, 2].T], axis=0)

    # Lane-dense output: pad d_model up to a multiple of 128.
    d_pad = ((d_model + 127) // 128) * 128
    if d_pad != d_model:
        w3 = jnp.pad(w3, ((0, 0), (0, d_pad - d_model)))
        bias_p = jnp.pad(bias, (0, d_pad - d_model))
    else:
        bias_p = bias
    b2d = bias_p.reshape(1, d_pad)

    tb = _choose_seqs_per_block(B, L, target_rows)   # sequences per grid step
    grid = (B // tb,)

    kernel = functools.partial(_token_emb_kernel, seqs=tb, seq_len=L, c_in=c_in)

    out = pl.pallas_call(
        kernel,
        out_shape=jax.ShapeDtypeStruct((B * L, d_pad), x.dtype),
        grid_spec=pl.GridSpec(
            grid=grid,
            in_specs=[
                # x: one tile of whole sequences per grid step (pipelined).
                pl.BlockSpec((tb, L, c_in), lambda i: (i, 0, 0)),
                # packed weight + bias: same block every step -> VMEM-resident.
                pl.BlockSpec((3 * c_in, d_pad), lambda i: (0, 0)),
                pl.BlockSpec((1, d_pad), lambda i: (0, 0)),
            ],
            out_specs=pl.BlockSpec((tb * L, d_pad), lambda i: (i, 0)),
        ),
        compiler_params=pltpu.CompilerParams(
            dimension_semantics=("parallel",),       # shard across TCs on v7x
            vmem_limit_bytes=32 * 1024 * 1024,       # above v5e's 16 MiB default
        ),
    )(x, w3, b2d)

    if d_pad != d_model:
        out = out[:, :d_model]
    return out.reshape(B, L, d_model)


def init_params(key, c_in, d_model):
    """Deterministic init matching nn.Conv1d + kaiming_normal_(fan_in, leaky_relu)."""
    kw, kb = jax.random.split(key)
    kernel_size = 3
    fan_in = c_in * kernel_size
    gain = math.sqrt(2.0 / (1.0 + 0.01 ** 2))
    std = gain / math.sqrt(fan_in)
    weight = std * jax.random.normal(kw, (d_model, c_in, kernel_size), dtype=jnp.float32)
    bound = 1.0 / math.sqrt(fan_in)
    bias = jax.random.uniform(kb, (d_model,), minval=-bound, maxval=bound, dtype=jnp.float32)
    return weight, bias


def _reference(x, weight, bias):
    """Pure-JAX reference of the circular conv (for sanity check)."""
    x_m1 = jnp.roll(x, 1, axis=1)
    x_p1 = jnp.roll(x, -1, axis=1)
    y = (jnp.einsum("blc,oc->blo", x_m1, weight[:, :, 0])
         + jnp.einsum("blc,oc->blo", x, weight[:, :, 1])
         + jnp.einsum("blc,oc->blo", x_p1, weight[:, :, 2])
         + bias[None, None, :])
    return y


if __name__ == "__main__":
    key = jax.random.PRNGKey(0)
    k_x, k_p = jax.random.split(key)

    B, L, c_in, d_model = 2, 8, 4, 32
    x = jax.random.normal(k_x, (B, L, c_in), dtype=jnp.float32)
    weight, bias = init_params(k_p, c_in, d_model)

    y = token_embedding(x, weight, bias)
    y = jax.block_until_ready(y)

    y_ref = _reference(x, weight, bias)
    assert y.shape == (B, L, d_model)
    assert jnp.allclose(y, y_ref, atol=1e-5, rtol=1e-5)

    print("KERNEL_OK")
</pallas_src>

<mosaic_0001>
module attributes {stable_mosaic.version = 11 : i64} {
  func.func @_token_emb_kernel(%arg0: i32, %arg1: memref<2x8x4xf32, #tpu.memory_space<vmem>>, %arg2: memref<12x128xf32, #tpu.memory_space<vmem>>, %arg3: memref<1x128xf32, #tpu.memory_space<vmem>>, %arg4: memref<16x128xf32, #tpu.memory_space<vmem>>) attributes {dimension_semantics = [#tpu.dimension_semantics<parallel>], iteration_bounds = array<i64: 1>, scalar_prefetch = 0 : i64, scratch_operands = 0 : i64, tpu.core_type = #tpu.core_type<tc>, window_params = [{transform_indices = @transform_0, window_bounds = array<i64: 2, 8, 4>}, {pipeline_mode = #tpu.pipeline_mode<synchronous>, transform_indices = @transform_1, window_bounds = array<i64: 12, 128>}, {pipeline_mode = #tpu.pipeline_mode<synchronous>, transform_indices = @transform_2, window_bounds = array<i64: 1, 128>}, {transform_indices = @transform_3, window_bounds = array<i64: 16, 128>}]} {
    %c0 = arith.constant 0 : index
    %c0_0 = arith.constant 0 : index
    %c0_1 = arith.constant 0 : index
    %0 = vector.load %arg1[%c0, %c0_0, %c0_1] : memref<2x8x4xf32, #tpu.memory_space<vmem>>, vector<2x8x4xf32>
    %1 = vector.extract_strided_slice %0 {offsets = [0, 7, 0], sizes = [2, 1, 4], strides = [1, 1, 1]} : vector<2x8x4xf32> to vector<2x1x4xf32>
    %2 = vector.extract_strided_slice %0 {offsets = [0, 0, 0], sizes = [2, 7, 4], strides = [1, 1, 1]} : vector<2x8x4xf32> to vector<2x7x4xf32>
    %3 = tpu.concatenate %1, %2 in 1 : vector<2x1x4xf32>, vector<2x7x4xf32> -> vector<2x8x4xf32>
    %4 = vector.extract_strided_slice %0 {offsets = [0, 1, 0], sizes = [2, 7, 4], strides = [1, 1, 1]} : vector<2x8x4xf32> to vector<2x7x4xf32>
    %5 = vector.extract_strided_slice %0 {offsets = [0, 0, 0], sizes = [2, 1, 4], strides = [1, 1, 1]} : vector<2x8x4xf32> to vector<2x1x4xf32>
    %6 = tpu.concatenate %4, %5 in 1 : vector<2x7x4xf32>, vector<2x1x4xf32> -> vector<2x8x4xf32>
    %7 = tpu.concatenate %3, %0, %6 in 2 : vector<2x8x4xf32>, vector<2x8x4xf32>, vector<2x8x4xf32> -> vector<2x8x12xf32>
    %8 = vector.shape_cast %7 : vector<2x8x12xf32> to vector<16x12xf32>
    %c0_2 = arith.constant 0 : index
    %c0_3 = arith.constant 0 : index
    %9 = vector.load %arg2[%c0_2, %c0_3] : memref<12x128xf32, #tpu.memory_space<vmem>>, vector<12x128xf32>
    %cst = arith.constant dense<0.000000e+00> : vector<16x128xf32>
    %10 = tpu.matmul %8, %9, %cst {dimension_numbers = #tpu.dot_dimension_numbers<[1], [0], [0], [1], [0, 0, 1, 1], [], []>} : vector<16x12xf32>, vector<12x128xf32>, vector<16x128xf32> -> vector<16x128xf32>
    %c0_4 = arith.constant 0 : index
    %c0_5 = arith.constant 0 : index
    %11 = vector.load %arg3[%c0_4, %c0_5] : memref<1x128xf32, #tpu.memory_space<vmem>>, vector<1x128xf32>
    %12 = vector.broadcast %11 : vector<1x128xf32> to vector<16x128xf32>
    %13 = arith.addf %10, %12 : vector<16x128xf32>
    %c0_6 = arith.constant 0 : index
    %c0_7 = arith.constant 0 : index
    %14 = vector.load %arg4[%c0_6, %c0_7] : memref<16x128xf32, #tpu.memory_space<vmem>>, vector<16x128xf32>
    tpu.vector_store %arg4[%c0_6, %c0_7], %13 {strides = array<i32>} : memref<16x128xf32, #tpu.memory_space<vmem>>, vector<16x128xf32>,
    return
  }
  func.func @transform_0(%arg0: i32) -> (i32, i32, i32) {
    %c0_i32 = arith.constant 0 : i32
    %c0_i32_0 = arith.constant 0 : i32
    %c0_i32_1 = arith.constant 0 : i32
    return %arg0, %c0_i32, %c0_i32_0 : i32, i32, i32
  }
  func.func @transform_1(%arg0: i32) -> (i32, i32) {
    %c0_i32 = arith.constant 0 : i32
    %c0_i32_0 = arith.constant 0 : i32
    %c0_i32_1 = arith.constant 0 : i32
    return %c0_i32, %c0_i32_0 : i32, i32
  }
  func.func @transform_2(%arg0: i32) -> (i32, i32) {
    %c0_i32 = arith.constant 0 : i32
    %c0_i32_0 = arith.constant 0 : i32
    %c0_i32_1 = arith.constant 0 : i32
    return %c0_i32, %c0_i32_0 : i32, i32
  }
  func.func @transform_3(%arg0: i32) -> (i32, i32) {
    %c0_i32 = arith.constant 0 : i32
    %c0_i32_0 = arith.constant 0 : i32
    return %arg0, %c0_i32 : i32, i32
  }
}

</mosaic_0001>

<llo_original>
// kernel: tpu_custom_call.1
$region0: #{tpu_custom_call.1}
  #allocation0 [shape = 'u32[]', space=smem, size = 0x4, offset = 0x4, fixed_abs, tag = 'smem constant byte address 0x4 - core index']
  #allocation1 [shape = 'u32[144,128]{1,0:T(1,128)}', space=vmem, size = 0x12000, scoped, tag = 'internal scratch']
  %s0 = inlined_call_operand.vmem [shape: f32[2,8,4], index: 0, kind: input, shape index: {}]
  %s1 = inlined_call_operand.vmem [shape: f32[12,128], index: 1, kind: input, shape index: {}]
  %s2 = inlined_call_operand.vmem [shape: f32[1,128], index: 2, kind: input, shape index: {}]
  %s3 = inlined_call_operand.hbm [shape: f32[16,128], index: 3, kind: output, shape index: {}]
  %s4 = sld [smem:[#allocation0]]
  $region22: #{tpu_custom_call.1} parent=0
    _
  %s6 = ssub.s32 1, %s4
  %s7 = scalar_select 0, %s6, %s4
  $region1: #{tpu_custom_call.1} parent=0
    #allocation2 [shape = 'u8[8192]{0}', space=vmem, size = 0x2000, scoped, tag = 'output window, operand 0, single buffered']
    #allocation3 [shape = 's32[1]{0}', space=sflag, size = 0x4, scoped, tag = 'scoped memory for tpu_custom_call.1']
    %8 = vsyncpa [#allocation3], 0
    // Predicated region
    $region2: #{tpu_custom_call.1} parent=1 // pred_check
      _
    $region3: #{tpu_custom_call.1} parent=1 // pred_check_branch
      %10 = sbr.rel (0) target = $region5
    $region4: #{tpu_custom_call.1} parent=1 // pred_region
      _
    $region5: #{tpu_custom_call.1} parent=1 // pred_fallthru
      _
    // Predicated region
    $region6: #{tpu_custom_call.1} parent=1 // pred_check
      _
    $region7: #{tpu_custom_call.1} parent=1 // pred_check_branch
      %12 = sbr.rel (0) target = $region9
    $region8: #{tpu_custom_call.1} parent=1 // pred_region
      _
    $region9: #{tpu_custom_call.1} parent=1 // pred_fallthru
      _
    // Predicated region
    $region10: #{tpu_custom_call.1} parent=1 // pred_check
      _
    $region11: #{tpu_custom_call.1} parent=1 // pred_check_branch
      %14 = sbr.rel (0) target = $region13
    $region12: #{tpu_custom_call.1} parent=1 // pred_region
      _
    $region13: #{tpu_custom_call.1} parent=1 // pred_fallthru
      _
    %v15 = vld [vmem:[%s0] sm:$0xff]
    %v16 = vld [vmem:[%s0 + $0x8] sm:$0xff]
    %v19 = vrot.slane %v15, 7
    %v20 = vrot.slane %v16, 7
    %vm23 = vcmask 1040384
    %v24 = vsel %vm23, %v19, %v19
    %v25 = vsel %vm23, %v20, %v20
    %v26 = vrot.slane %v15, 1
    %v27 = vrot.slane %v16, 1
    %vm30 = vcmask 1046528
    %v31 = vsel %vm30, %v26, %v26
    %v32 = vsel %vm30, %v27, %v27
    %33 = vrot.lane.b32.xlu0 %v15, 4
    %v34 = vpop.permute.xlu0 %33
    %35 = vrot.lane.b32.xlu0 %v16, 4
    %v36 = vpop.permute.xlu0 %35
    %41 = vrot.lane.b32.xlu0 %v31, 8
    %v42 = vpop.permute.xlu0 %41
    %43 = vrot.lane.b32.xlu0 %v32, 8
    %v44 = vpop.permute.xlu0 %43
    %vm47 = vcmask 31744
    %v48 = vsel %vm47, %v24, %v34
    %v49 = vsel %vm47, %v25, %v36
    %vm50 = vcmask 64512
    %v51 = vsel %vm50, %v48, %v42
    %v52 = vsel %vm50, %v49, %v44
    %v53 = vld [vmem:[%s1] sm:$0xff]
    %v54 = vld [vmem:[%s1 + $0x8] sm:$0xf]
    %v55 = vld [vmem:[%s2] sm:$0x1]
    %v57 = vlaneseq
    %v58 = vshrl.u32 %v57, 7
    %v59 = vsub.s32 0, %v58
    %v60 = vrot.slane %v55, %v59
    %vm62 = vcmask 97280
    %v64 = vsel %vm62, %v51, 0
    %v67 = vsel %vm62, %v52, 0
    %vm69 = vcmask 1043456
    %v71 = vsel %vm69, %v54, 0
    %73 = vmatprep.subr.mxu0 0.0
    %74 = vmatpush1.msra.mxu0 %v53
    %75 = vmatprep.subr.mxu0 0.0
    %76 = vmatpush1.msra.mxu0 %v71
    %77 = vmatprep.subr.mxu0 0.0
    %78 = vmatpush1.msra.mxu0 0.0
    %79 = vmatprep.subr.mxu0 0.0
    %80 = vmatpush1.msra.mxu0 0.0
    %81 = vmatprep.subr.mxu0 0.0
    %82 = vmatpush1.msra.mxu0 0.0
    %83 = vmatprep.subr.mxu0 0.0
    %84 = vmatpush1.msra.mxu0 0.0
    %85 = vmatprep.subr.mxu0 0.0
    %86 = vmatpush1.msra.mxu0 0.0
    %87 = vmatprep.subr.mxu0 0.0
    %88 = vmatpush1.msra.mxu0 0.0
    %89 = vmatprep.subr.mxu0 0.0
    %90 = vmatpush1.msra.mxu0 0.0
    %91 = vmatprep.subr.mxu0 0.0
    %92 = vmatpush1.msra.mxu0 0.0
    %93 = vmatprep.subr.mxu0 0.0
    %94 = vmatpush1.msra.mxu0 0.0
    %95 = vmatprep.subr.mxu0 0.0
    %96 = vmatpush1.msra.mxu0 0.0
    %97 = vmatprep.subr.mxu0 0.0
    %98 = vmatpush1.msra.mxu0 0.0
    %99 = vmatprep.subr.mxu0 0.0
    %100 = vmatpush1.msra.mxu0 0.0
    %101 = vmatprep.subr.mxu0 0.0
    %102 = vmatpush1.msra.mxu0 0.0
    %103 = vmatprep.subr.mxu0 0.0
    %104 = vmatpush1.msra.mxu0 0.0
    %105 = vmatprep.subr.mxu0 0.0
    %106 = vmatpush1.msra.mxu0 0.0
    %107 = vmatprep.subr.mxu0 0.0
    %108 = vmatpush1.msra.mxu0 0.0
    %109 = vmatprep.subr.mxu0 0.0
    %110 = vmatpush1.msra.mxu0 0.0
    %111 = vmatprep.subr.mxu0 0.0
    %112 = vmatpush1.msra.mxu0 0.0
    %113 = vmatprep.subr.mxu0 0.0
    %114 = vmatpush1.msra.mxu0 0.0
    %115 = vmatprep.subr.mxu0 0.0
    %116 = vmatpush1.msra.mxu0 0.0
    %117 = vmatprep.subr.mxu0 0.0
    %118 = vmatpush1.msra.mxu0 0.0
    %119 = vmatprep.subr.mxu0 0.0
    %120 = vmatpush1.msra.mxu0 0.0
    %121 = vmatprep.subr.mxu0 0.0
    %122 = vmatpush1.msra.mxu0 0.0
    %123 = vmatprep.subr.mxu0 0.0
    %124 = vmatpush1.msra.mxu0 0.0
    %125 = vmatprep.subr.mxu0 0.0
    %126 = vmatpush1.msra.mxu0 0.0
    %127 = vmatprep.subr.mxu0 0.0
    %128 = vmatpush1.msra.mxu0 0.0
    %129 = vmatprep.subr.mxu0 0.0
    %130 = vmatpush1.msra.mxu0 0.0
    %131 = vmatprep.subr.mxu0 0.0
    %132 = vmatpush1.msra.mxu0 0.0
    %133 = vmatprep.subr.mxu0 0.0
    %134 = vmatpush1.msra.mxu0 0.0
    %135 = vmatprep.subr.mxu0 0.0
    %136 = vmatpush1.msra.mxu0 0.0
    %137 = vmatprep.mubr.f32.mxu0 0.0
    %138 = vmatmul.mubr.f32.gmra.mrb[0].mxu0 %v64
    %v139 = vpop.f32.mrb[0].mxu0
    %v140 = vadd.f32 %v60, %v139
    %v141 = vpop.f32.mrb[0].mxu0
    %142 = vmatprep.mubr.f32.mxu0 0.0
    %143 = vmatmul.mubr.f32.gmra.mrb[0].mxu0 %v67
    %v144 = vpop.f32.mrb[0].mxu0
    %v145 = vadd.f32 %v60, %v144
    %v146 = vpop.f32.mrb[0].mxu0
    %147 = vdwg.mxu0
    %148 = vst [vmem:[#allocation2] sm:$0xff] %v140
    %149 = vst [vmem:[#allocation2 + $0x8] sm:$0xff] %v145
    // Predicated region
    $region14: #{tpu_custom_call.1} parent=1 // pred_check
      _
    $region15: #{tpu_custom_call.1} parent=1 // pred_check_branch
      %151 = sbr.rel (0) target = $region17
    $region16: #{tpu_custom_call.1} parent=1 // pred_region
      %s153 = ssub.s32 256, 256
      %154 = vsyncadd [#allocation3], %s153
      %s155 = sshll.u32 [#allocation2], 4
      %s156 = int_to_ptr.vmem [resolvable:$true] %s155
      %161 = dma.vmem_to_hbm [thread:$0]  %s156, 256, %s3, [#allocation3], 128, 128, 8
    $region17: #{tpu_custom_call.1} parent=1 // pred_fallthru
      _
    // Predicated region
    $region18: #{tpu_custom_call.1} parent=1 // pred_check
      _
    $region19: #{tpu_custom_call.1} parent=1 // pred_check_branch
      %163 = sbr.rel (0) target = $region21
    $region20: #{tpu_custom_call.1} parent=1 // pred_region
      %164 = dma.done [#allocation3], 256
    $region21: #{tpu_custom_call.1} parent=1 // pred_fallthru
      _
    %165 = vsyncpa [#allocation3], 1

</llo_original>
